<compile_context>
chip_gen: v7x
topology: tpu7x:2x2x1
jax: 0.10.0
libtpu: 0.0.40
codegen_flags: <defaults>
</compile_context>

<pallas_src>
import functools

import numpy as np
import jax
import jax.numpy as jnp
from jax.experimental import pallas as pl
from jax.experimental.pallas import tpu as pltpu

# ----------------------------- configuration --------------------------------
NEIGHBOUR_LIST = [[0, 1], [0, 1, 2], [1, 2, 3], [2, 3]]
JOINT_NUM = len(NEIGHBOUR_LIST)                 # 4
IN_CHANNELS = 8                                 # channels AFTER unpool
OUT_CHANNELS = 16
KERNEL_SIZE = 3                                 # odd -> kernel_even=False -> used as-is
PADDING = 1
POOLING_LIST = [[0, 1], [2, 3]]                 # 2 input edges -> 4 output edges
CPE = IN_CHANNELS // JOINT_NUM                  # channels_per_edge = 2
IN_EDGES = len(POOLING_LIST)                    # 2
OUT_EDGES = sum(len(p) for p in POOLING_LIST)   # 4
CIN_PRE = IN_EDGES * CPE                        # channels of the raw forward() input = 4
PRELU_ALPHA = 0.25                              # nn.PReLU() default init

BATCH = 2
T_IN = 8                                        # raw time length; x2 upsample -> 16


# ----------------------------- parameter setup ------------------------------
def build_conv_mask(neighbour_list, in_ch, out_ch, joint_num, k):
    ipj = in_ch // joint_num
    opj = out_ch // joint_num
    mask = np.zeros((out_ch, in_ch, k), np.float32)
    for i, nb in enumerate(neighbour_list):
        expanded = [j * ipj + c for j in nb for c in range(ipj)]
        mask[opj * i:opj * (i + 1), expanded, :] = 1.0
    return mask


def build_unpool_weight(pooling_list, cpe):
    out_e = sum(len(p) for p in pooling_list)
    in_e = len(pooling_list)
    w = np.zeros((out_e * cpe, in_e * cpe), np.float32)
    for i, pair in enumerate(pooling_list):
        for j in pair:
            for c in range(cpe):
                w[j * cpe + c, i * cpe + c] = 1.0
    return w


def make_params(key):
    k = jax.random.split(key, 6)
    mask1 = jnp.asarray(build_conv_mask(NEIGHBOUR_LIST, IN_CHANNELS, IN_CHANNELS,
                                        JOINT_NUM, KERNEL_SIZE))
    mask2 = jnp.asarray(build_conv_mask(NEIGHBOUR_LIST, IN_CHANNELS, OUT_CHANNELS,
                                        JOINT_NUM, KERNEL_SIZE))
    mask_sc = jnp.asarray(build_conv_mask(NEIGHBOUR_LIST, IN_CHANNELS, OUT_CHANNELS,
                                          JOINT_NUM, 1))
    params = {
        "w_unpool": jnp.asarray(build_unpool_weight(POOLING_LIST, CPE)),
        # masked SkeletonConv weights (weight * mask), layout (O, I, K)
        "w1": jax.random.uniform(k[0], (IN_CHANNELS, IN_CHANNELS, KERNEL_SIZE),
                                 jnp.float32, -0.3, 0.3) * mask1,
        "b1": jax.random.uniform(k[1], (IN_CHANNELS,), jnp.float32, -0.2, 0.2),
        "w2": jax.random.uniform(k[2], (OUT_CHANNELS, IN_CHANNELS, KERNEL_SIZE),
                                 jnp.float32, -0.3, 0.3) * mask2,
        "b2": jax.random.uniform(k[3], (OUT_CHANNELS,), jnp.float32, -0.2, 0.2),
        "w_sc": jax.random.uniform(k[4], (OUT_CHANNELS, IN_CHANNELS, 1),
                                   jnp.float32, -0.3, 0.3) * mask_sc,
        "b_sc": jax.random.uniform(k[5], (OUT_CHANNELS,), jnp.float32, -0.2, 0.2),
        "a1": jnp.asarray(PRELU_ALPHA, jnp.float32),
        "a_out": jnp.asarray(PRELU_ALPHA, jnp.float32),
    }
    return params


# -------------------- upsample as a (block-diagonal) matrix ------------------
def _build_upsample_matrix(t_in, batch, lpad):
    """Matrix U so that (x_flat @ U) == per-batch linear x2 upsample (align_corners=False),
    with the batch laid out block-diagonally along lanes and zero-padded to `lpad`."""
    t2 = 2 * t_in
    u = np.zeros((t_in, t2), np.float32)
    for d in range(t2):
        src = max((d + 0.5) * (t_in / t2) - 0.5, 0.0)
        i0 = int(np.floor(src))
        i1 = min(i0 + 1, t_in - 1)
        w = src - i0
        u[i0, d] += 1.0 - w
        u[i1, d] += w
    u_blk = np.zeros((batch * t_in, lpad), np.float32)
    for b in range(batch):
        u_blk[b * t_in:(b + 1) * t_in, b * t2:(b + 1) * t2] = u
    return u_blk


# ------------------------------ Pallas kernel --------------------------------
def _srt_kernel(x_ref, u_ref, w1_ref, w2_ref, wsc_ref, alpha_ref, o_ref, *, seg_len):
    """Fused: upsample -> (unpool-folded) conv3 -> PReLU -> conv3 -> + shortcut -> PReLU.

    x_ref    : (CIN_PRE, N*T)                 bf16, batch folded onto lanes
    u_ref    : (N*T, LPAD)                    bf16, block-diag upsample, zero-padded cols
    w1_ref   : (IN_CHANNELS, 3*CIN_PRE + 1)   bf16, unpool folded, taps flat, bias col
    w2_ref   : (OUT_CHANNELS, 3*IN_CHANNELS+1) bf16, taps flat, bias col
    wsc_ref  : (OUT_CHANNELS, CIN_PRE + 1)    bf16, unpool folded, bias col
    alpha_ref: (2,) f32 in SMEM               PReLU alphas (residual, output)
    o_ref    : (OUT_CHANNELS, LPAD)           f32, lane-dense
    """
    lpad = o_ref.shape[-1]

    # fused nn.Upsample(scale_factor=2, mode='linear', align_corners=False)
    xu = jnp.dot(x_ref[...], u_ref[...], preferred_element_type=jnp.float32)

    # per-batch-segment boundary masks for the zero-padded k=3 conv (computed once)
    ti = jax.lax.broadcasted_iota(jnp.int32, (1, lpad), 1)
    not_first = (ti % seg_len) != 0
    not_last = (ti % seg_len) != (seg_len - 1)
    ones_row = jnp.ones((1, lpad), jnp.float32)

    def conv3(z, w_ref):
        # z: (C, lpad) f32. One MXU matmul: [z(t-1); z(t); z(t+1); ones] along sublanes.
        zcol = jnp.zeros((z.shape[0], 1), jnp.float32)
        z_prev = jnp.where(not_first, jnp.concatenate([zcol, z[:, :-1]], axis=1), 0.0)
        z_next = jnp.where(not_last, jnp.concatenate([z[:, 1:], zcol], axis=1), 0.0)
        stack = jnp.concatenate([z_prev, z, z_next, ones_row], axis=0)
        return jnp.dot(w_ref[...], stack.astype(jnp.bfloat16),
                       preferred_element_type=jnp.float32)

    def prelu(z, a):
        return jnp.where(z >= 0.0, z, a * z)

    # residual branch: SkeletonConv(k=3) -> PReLU -> SkeletonConv(k=3)
    h = prelu(conv3(xu, w1_ref), alpha_ref[0])
    r = conv3(h, w2_ref)

    # shortcut branch: SkeletonConv(k=1) (unpool + bias folded into the weight)
    sc_in = jnp.concatenate([xu, ones_row], axis=0).astype(jnp.bfloat16)
    s = jnp.dot(wsc_ref[...], sc_in, preferred_element_type=jnp.float32)

    # sum + final PReLU
    o_ref[...] = prelu(r + s, alpha_ref[1])


# --------------------------------- wrapper -----------------------------------
def skeleton_residual_transpose(x, params):
    n, c, t = x.shape
    t2 = 2 * t
    lpad = ((n * t2 + 127) // 128) * 128                      # lane-dense width

    hi = jax.lax.Precision.HIGHEST
    wu = params["w_unpool"]                                   # (8, 4)

    # trace-time weight prep (exact algebraic rewrites; bias folded as last column)
    w1f = jnp.einsum("oik,ic->okc", params["w1"], wu, precision=hi)        # (8,3,4)
    w1_aug = jnp.concatenate(
        [w1f.reshape(IN_CHANNELS, KERNEL_SIZE * CIN_PRE), params["b1"][:, None]], axis=1)
    w2f = jnp.transpose(params["w2"], (0, 2, 1))                            # (16,3,8)
    w2_aug = jnp.concatenate(
        [w2f.reshape(OUT_CHANNELS, KERNEL_SIZE * IN_CHANNELS), params["b2"][:, None]],
        axis=1)
    wscf = jnp.einsum("oi,ic->oc", params["w_sc"][:, :, 0], wu, precision=hi)  # (16,4)
    wsc_aug = jnp.concatenate([wscf, params["b_sc"][:, None]], axis=1)
    alphas = jnp.stack([params["a1"], params["a_out"]]).astype(jnp.float32)

    u_blk = jnp.asarray(_build_upsample_matrix(t, n, lpad))
    x_flat = jnp.transpose(x, (1, 0, 2)).reshape(c, n * t)    # fold batch onto lanes

    bf16 = jnp.bfloat16
    kernel = functools.partial(_srt_kernel, seg_len=t2)
    out_pad = pl.pallas_call(
        kernel,
        out_shape=jax.ShapeDtypeStruct((OUT_CHANNELS, lpad), jnp.float32),
        in_specs=[
            pl.BlockSpec(memory_space=pltpu.MemorySpace.VMEM),   # x_flat
            pl.BlockSpec(memory_space=pltpu.MemorySpace.VMEM),   # upsample matrix
            pl.BlockSpec(memory_space=pltpu.MemorySpace.VMEM),   # w1 (+bias)
            pl.BlockSpec(memory_space=pltpu.MemorySpace.VMEM),   # w2 (+bias)
            pl.BlockSpec(memory_space=pltpu.MemorySpace.VMEM),   # w_sc (+bias)
            pl.BlockSpec(memory_space=pltpu.MemorySpace.SMEM),   # PReLU alphas
        ],
        out_specs=pl.BlockSpec(memory_space=pltpu.MemorySpace.VMEM),
    )(x_flat.astype(bf16), u_blk.astype(bf16), w1_aug.astype(bf16),
      w2_aug.astype(bf16), wsc_aug.astype(bf16), alphas)

    out = out_pad[:, :n * t2].reshape(OUT_CHANNELS, n, t2)
    return jnp.transpose(out, (1, 0, 2))                      # (N, OUT_CHANNELS, T2)


# --------------------------- pure-JAX reference ------------------------------
def upsample_linear_x2(x):
    """nn.Upsample(scale_factor=2, mode='linear', align_corners=False) on NCT."""
    n, c, t = x.shape
    t2 = 2 * t
    src = jnp.maximum((jnp.arange(t2, dtype=jnp.float32) + 0.5) * (t / t2) - 0.5, 0.0)
    i0 = jnp.floor(src).astype(jnp.int32)
    i1 = jnp.minimum(i0 + 1, t - 1)
    w = src - i0.astype(jnp.float32)
    return x[:, :, i0] * (1.0 - w) + x[:, :, i1] * w


def reference_forward(x, params):
    # Independent f32 reference (unfolded weights, explicit unpool, lax convs).
    # The kernel feeds bf16 operands to the MXU, so pre-round the large operands
    # through bf16 to isolate that intended quantization from structural errors.
    rnd = lambda a: a.astype(jnp.bfloat16).astype(jnp.float32)
    x = rnd(x)
    w1, w2, wsc = rnd(params["w1"]), rnd(params["w2"]), rnd(params["w_sc"])

    xu = upsample_linear_x2(x)
    y0 = jnp.einsum("oc,nct->not", params["w_unpool"], xu,
                    precision=jax.lax.Precision.HIGHEST)

    def conv1d(z, w, b, pad):
        out = jax.lax.conv_general_dilated(
            z, w, window_strides=(1,), padding=[(pad, pad)],
            dimension_numbers=("NCH", "OIH", "NCH"),
            precision=jax.lax.Precision.HIGHEST)
        return out + b[None, :, None]

    def prelu(z, a):
        return jnp.where(z >= 0.0, z, a * z)

    h = prelu(conv1d(y0, w1, params["b1"], PADDING), params["a1"])
    r = conv1d(h, w2, params["b2"], PADDING)
    s = conv1d(y0, wsc, params["b_sc"], 0)
    return prelu(r + s, params["a_out"])


# ---------------------------------- main --------------------------------------
if __name__ == "__main__":
    key = jax.random.PRNGKey(0)
    kx, kp = jax.random.split(key)
    x = jax.random.normal(kx, (BATCH, CIN_PRE, T_IN), jnp.float32)
    params = make_params(kp)

    out = jax.block_until_ready(jax.jit(skeleton_residual_transpose)(x, params))
    ref = jax.block_until_ready(reference_forward(x, params))

    # Tolerance accounts for intentional bf16 MXU operands / in-kernel bf16 casts.
    np.testing.assert_allclose(np.asarray(out), np.asarray(ref), rtol=5e-2, atol=5e-2)
    print("KERNEL_OK")
</pallas_src>

<mosaic_0001>
module attributes {stable_mosaic.version = 11 : i64} {
  func.func @_srt_kernel(%arg0: memref<4x16xbf16, #tpu.memory_space<vmem>>, %arg1: memref<16x128xbf16, #tpu.memory_space<vmem>>, %arg2: memref<8x13xbf16, #tpu.memory_space<vmem>>, %arg3: memref<16x25xbf16, #tpu.memory_space<vmem>>, %arg4: memref<16x5xbf16, #tpu.memory_space<vmem>>, %arg5: memref<2xf32, #tpu.memory_space<smem>>, %arg6: memref<16x128xf32, #tpu.memory_space<vmem>>) attributes {dimension_semantics = [], scalar_prefetch = 0 : i64, scratch_operands = 0 : i64, tpu.core_type = #tpu.core_type<tc>} {
    %c0 = arith.constant 0 : index
    %c0_0 = arith.constant 0 : index
    %0 = vector.load %arg0[%c0, %c0_0] : memref<4x16xbf16, #tpu.memory_space<vmem>>, vector<4x16xbf16>
    %c0_1 = arith.constant 0 : index
    %c0_2 = arith.constant 0 : index
    %1 = vector.load %arg1[%c0_1, %c0_2] : memref<16x128xbf16, #tpu.memory_space<vmem>>, vector<16x128xbf16>
    %cst = arith.constant dense<0.000000e+00> : vector<4x128xf32>
    %2 = tpu.matmul %0, %1, %cst {dimension_numbers = #tpu.dot_dimension_numbers<[1], [0], [0], [1], [0, 0, 1, 1], [], []>} : vector<4x16xbf16>, vector<16x128xbf16>, vector<4x128xf32> -> vector<4x128xf32>
    %3 = tpu.iota {dimensions = array<i32: 1>} : vector<1x128xi32>
    %c16_i32 = arith.constant 16 : i32
    %c0_i32 = arith.constant 0 : i32
    %4 = arith.cmpi eq, %c16_i32, %c0_i32 : i32
    %c1_i32 = arith.constant 1 : i32
    %5 = arith.select %4, %c1_i32, %c16_i32 : i32
    %6 = vector.broadcast %5 : i32 to vector<1x128xi32>
    %7 = arith.remsi %3, %6 : vector<1x128xi32>
    %c0_i32_3 = arith.constant 0 : i32
    %8 = vector.broadcast %c0_i32_3 : i32 to vector<1x128xi32>
    %9 = arith.cmpi ne, %7, %8 : vector<1x128xi32>
    %c0_i32_4 = arith.constant 0 : i32
    %10 = vector.broadcast %c0_i32_4 : i32 to vector<1x128xi32>
    %11 = arith.cmpi slt, %7, %10 : vector<1x128xi32>
    %c0_i32_5 = arith.constant 0 : i32
    %12 = arith.cmpi slt, %5, %c0_i32_5 : i32
    %13 = vector.broadcast %12 : i1 to vector<1x128xi1>
    %14 = vector.broadcast %13 : vector<1x128xi1> to vector<1x128xi1>
    %15 = arith.xori %11, %14 : vector<1x128xi1>
    %16 = arith.andi %15, %9 : vector<1x128xi1>
    %17 = vector.broadcast %5 : i32 to vector<1x128xi32>
    %18 = arith.addi %7, %17 : vector<1x128xi32>
    %19 = arith.select %16, %18, %7 : vector<1x128xi1>, vector<1x128xi32>
    %c0_i32_6 = arith.constant 0 : i32
    %20 = vector.broadcast %c0_i32_6 : i32 to vector<1x128xi32>
    %21 = arith.cmpi ne, %19, %20 : vector<1x128xi32>
    %c16_i32_7 = arith.constant 16 : i32
    %c0_i32_8 = arith.constant 0 : i32
    %22 = arith.cmpi eq, %c16_i32_7, %c0_i32_8 : i32
    %c1_i32_9 = arith.constant 1 : i32
    %23 = arith.select %22, %c1_i32_9, %c16_i32_7 : i32
    %24 = vector.broadcast %23 : i32 to vector<1x128xi32>
    %25 = arith.remsi %3, %24 : vector<1x128xi32>
    %c0_i32_10 = arith.constant 0 : i32
    %26 = vector.broadcast %c0_i32_10 : i32 to vector<1x128xi32>
    %27 = arith.cmpi ne, %25, %26 : vector<1x128xi32>
    %c0_i32_11 = arith.constant 0 : i32
    %28 = vector.broadcast %c0_i32_11 : i32 to vector<1x128xi32>
    %29 = arith.cmpi slt, %25, %28 : vector<1x128xi32>
    %c0_i32_12 = arith.constant 0 : i32
    %30 = arith.cmpi slt, %23, %c0_i32_12 : i32
    %31 = vector.broadcast %30 : i1 to vector<1x128xi1>
    %32 = vector.broadcast %31 : vector<1x128xi1> to vector<1x128xi1>
    %33 = arith.xori %29, %32 : vector<1x128xi1>
    %34 = arith.andi %33, %27 : vector<1x128xi1>
    %35 = vector.broadcast %23 : i32 to vector<1x128xi32>
    %36 = arith.addi %25, %35 : vector<1x128xi32>
    %37 = arith.select %34, %36, %25 : vector<1x128xi1>, vector<1x128xi32>
    %c15_i32 = arith.constant 15 : i32
    %38 = vector.broadcast %c15_i32 : i32 to vector<1x128xi32>
    %39 = arith.cmpi ne, %37, %38 : vector<1x128xi32>
    %cst_13 = arith.constant 1.000000e+00 : f32
    %40 = vector.broadcast %cst_13 : f32 to vector<1x128xf32>
    %cst_14 = arith.constant 0.000000e+00 : f32
    %41 = vector.broadcast %cst_14 : f32 to vector<4x1xf32>
    %42 = vector.extract_strided_slice %2 {offsets = [0, 0], sizes = [4, 127], strides = [1, 1]} : vector<4x128xf32> to vector<4x127xf32>
    %43 = tpu.concatenate %41, %42 in 1 : vector<4x1xf32>, vector<4x127xf32> -> vector<4x128xf32>
    %cst_15 = arith.constant 0.000000e+00 : f32
    %44 = vector.shape_cast %21 : vector<1x128xi1> to vector<1x128xi1>
    %45 = vector.broadcast %44 : vector<1x128xi1> to vector<4x128xi1>
    %46 = vector.broadcast %cst_15 : f32 to vector<4x128xf32>
    %47 = arith.select %45, %43, %46 : vector<4x128xi1>, vector<4x128xf32>
    %48 = vector.extract_strided_slice %2 {offsets = [0, 1], sizes = [4, 127], strides = [1, 1]} : vector<4x128xf32> to vector<4x127xf32>
    %49 = tpu.concatenate %48, %41 in 1 : vector<4x127xf32>, vector<4x1xf32> -> vector<4x128xf32>
    %cst_16 = arith.constant 0.000000e+00 : f32
    %50 = vector.shape_cast %39 : vector<1x128xi1> to vector<1x128xi1>
    %51 = vector.broadcast %50 : vector<1x128xi1> to vector<4x128xi1>
    %52 = vector.broadcast %cst_16 : f32 to vector<4x128xf32>
    %53 = arith.select %51, %49, %52 : vector<4x128xi1>, vector<4x128xf32>
    %54 = tpu.concatenate %47, %2, %53, %40 in 0 : vector<4x128xf32>, vector<4x128xf32>, vector<4x128xf32>, vector<1x128xf32> -> vector<13x128xf32>
    %c0_17 = arith.constant 0 : index
    %c0_18 = arith.constant 0 : index
    %55 = vector.load %arg2[%c0_17, %c0_18] : memref<8x13xbf16, #tpu.memory_space<vmem>>, vector<8x13xbf16>
    %56 = arith.truncf %54 : vector<13x128xf32> to vector<13x128xbf16>
    %cst_19 = arith.constant dense<0.000000e+00> : vector<8x128xf32>
    %57 = tpu.matmul %55, %56, %cst_19 {dimension_numbers = #tpu.dot_dimension_numbers<[1], [0], [0], [1], [0, 0, 1, 1], [], []>} : vector<8x13xbf16>, vector<13x128xbf16>, vector<8x128xf32> -> vector<8x128xf32>
    %c0_20 = arith.constant 0 : index
    %58 = memref.load %arg5[%c0_20] : memref<2xf32, #tpu.memory_space<smem>>
    %cst_21 = arith.constant 0.000000e+00 : f32
    %59 = vector.broadcast %cst_21 : f32 to vector<8x128xf32>
    %60 = arith.cmpf oge, %57, %59 : vector<8x128xf32>
    %61 = vector.broadcast %58 : f32 to vector<8x128xf32>
    %62 = arith.mulf %61, %57 : vector<8x128xf32>
    %63 = arith.select %60, %57, %62 : vector<8x128xi1>, vector<8x128xf32>
    %cst_22 = arith.constant 0.000000e+00 : f32
    %64 = vector.broadcast %cst_22 : f32 to vector<8x1xf32>
    %65 = vector.extract_strided_slice %63 {offsets = [0, 0], sizes = [8, 127], strides = [1, 1]} : vector<8x128xf32> to vector<8x127xf32>
    %66 = tpu.concatenate %64, %65 in 1 : vector<8x1xf32>, vector<8x127xf32> -> vector<8x128xf32>
    %cst_23 = arith.constant 0.000000e+00 : f32
    %67 = vector.shape_cast %21 : vector<1x128xi1> to vector<1x128xi1>
    %68 = vector.broadcast %67 : vector<1x128xi1> to vector<8x128xi1>
    %69 = vector.broadcast %cst_23 : f32 to vector<8x128xf32>
    %70 = arith.select %68, %66, %69 : vector<8x128xi1>, vector<8x128xf32>
    %71 = vector.extract_strided_slice %63 {offsets = [0, 1], sizes = [8, 127], strides = [1, 1]} : vector<8x128xf32> to vector<8x127xf32>
    %72 = tpu.concatenate %71, %64 in 1 : vector<8x127xf32>, vector<8x1xf32> -> vector<8x128xf32>
    %cst_24 = arith.constant 0.000000e+00 : f32
    %73 = vector.shape_cast %39 : vector<1x128xi1> to vector<1x128xi1>
    %74 = vector.broadcast %73 : vector<1x128xi1> to vector<8x128xi1>
    %75 = vector.broadcast %cst_24 : f32 to vector<8x128xf32>
    %76 = arith.select %74, %72, %75 : vector<8x128xi1>, vector<8x128xf32>
    %77 = tpu.concatenate %70, %63, %76, %40 in 0 : vector<8x128xf32>, vector<8x128xf32>, vector<8x128xf32>, vector<1x128xf32> -> vector<25x128xf32>
    %c0_25 = arith.constant 0 : index
    %c0_26 = arith.constant 0 : index
    %78 = vector.load %arg3[%c0_25, %c0_26] : memref<16x25xbf16, #tpu.memory_space<vmem>>, vector<16x25xbf16>
    %79 = arith.truncf %77 : vector<25x128xf32> to vector<25x128xbf16>
    %cst_27 = arith.constant dense<0.000000e+00> : vector<16x128xf32>
    %80 = tpu.matmul %78, %79, %cst_27 {dimension_numbers = #tpu.dot_dimension_numbers<[1], [0], [0], [1], [0, 0, 1, 1], [], []>} : vector<16x25xbf16>, vector<25x128xbf16>, vector<16x128xf32> -> vector<16x128xf32>
    %81 = tpu.concatenate %2, %40 in 0 : vector<4x128xf32>, vector<1x128xf32> -> vector<5x128xf32>
    %82 = arith.truncf %81 : vector<5x128xf32> to vector<5x128xbf16>
    %c0_28 = arith.constant 0 : index
    %c0_29 = arith.constant 0 : index
    %83 = vector.load %arg4[%c0_28, %c0_29] : memref<16x5xbf16, #tpu.memory_space<vmem>>, vector<16x5xbf16>
    %cst_30 = arith.constant dense<0.000000e+00> : vector<16x128xf32>
    %84 = tpu.matmul %83, %82, %cst_30 {dimension_numbers = #tpu.dot_dimension_numbers<[1], [0], [0], [1], [0, 0, 1, 1], [], []>} : vector<16x5xbf16>, vector<5x128xbf16>, vector<16x128xf32> -> vector<16x128xf32>
    %85 = arith.addf %80, %84 : vector<16x128xf32>
    %c1 = arith.constant 1 : index
    %86 = memref.load %arg5[%c1] : memref<2xf32, #tpu.memory_space<smem>>
    %cst_31 = arith.constant 0.000000e+00 : f32
    %87 = vector.broadcast %cst_31 : f32 to vector<16x128xf32>
    %88 = arith.cmpf oge, %85, %87 : vector<16x128xf32>
    %89 = vector.broadcast %86 : f32 to vector<16x128xf32>
    %90 = arith.mulf %89, %85 : vector<16x128xf32>
    %91 = arith.select %88, %85, %90 : vector<16x128xi1>, vector<16x128xf32>
    %c0_32 = arith.constant 0 : index
    %c0_33 = arith.constant 0 : index
    %92 = vector.load %arg6[%c0_32, %c0_33] : memref<16x128xf32, #tpu.memory_space<vmem>>, vector<16x128xf32>
    tpu.vector_store %arg6[%c0_32, %c0_33], %91 {strides = array<i32>} : memref<16x128xf32, #tpu.memory_space<vmem>>, vector<16x128xf32>,
    return
  }
}

</mosaic_0001>

<llo_original>
// kernel: skeleton_residual_transpose.1
$region0: #{skeleton_residual_transpose.1}
  #allocation0 [shape = 'u32[]', space=smem, size = 0x4, offset = 0x4, fixed_abs, tag = 'smem constant byte address 0x4 - core index']
  #allocation1 [shape = 'u32[144,128]{1,0:T(1,128)}', space=vmem, size = 0x12000, scoped, tag = 'internal scratch']
  %s0 = inlined_call_operand.vmem [shape: bf16[4,16], index: 0, kind: input, shape index: {}]
  %s1 = inlined_call_operand.vmem [shape: bf16[16,128], index: 1, kind: input, shape index: {}]
  %s2 = inlined_call_operand.vmem [shape: bf16[8,13], index: 2, kind: input, shape index: {}]
  %s3 = inlined_call_operand.vmem [shape: bf16[16,25], index: 3, kind: input, shape index: {}]
  %s4 = inlined_call_operand.vmem [shape: bf16[16,5], index: 4, kind: input, shape index: {}]
  %s5 = inlined_call_operand.vmem [shape: f32[2], index: 5, kind: input, shape index: {}]
  %s6 = inlined_call_operand.vmem [shape: f32[16,128], index: 6, kind: output, shape index: {}]
  %s7 = sld [smem:[#allocation0]]
  $region38: #{skeleton_residual_transpose.1} parent=0
    _
  %s9 = ssub.s32 1, %s7
  %s10 = scalar_select 0, %s9, %s7
  $region1: #{skeleton_residual_transpose.1} parent=0
    #allocation2 [shape = 'u8[512]{0}', space=smem, size = 0x200, scoped, tag = 'input window, operand 5, single buffered']
    #allocation3 [shape = 's32[1]{0}', space=sflag, size = 0x4, scoped, tag = 'scoped memory for skeleton_residual_transpose.1']
    %11 = vsyncpa [#allocation3], 0
    // Predicated region
    $region2: #{skeleton_residual_transpose.1} parent=1 // pred_check
      _
    $region3: #{skeleton_residual_transpose.1} parent=1 // pred_check_branch
      %13 = sbr.rel (0) target = $region5
    $region4: #{skeleton_residual_transpose.1} parent=1 // pred_region
      _
    $region5: #{skeleton_residual_transpose.1} parent=1 // pred_fallthru
      _
    // Predicated region
    $region6: #{skeleton_residual_transpose.1} parent=1 // pred_check
      _
    $region7: #{skeleton_residual_transpose.1} parent=1 // pred_check_branch
      %15 = sbr.rel (0) target = $region9
    $region8: #{skeleton_residual_transpose.1} parent=1 // pred_region
      _
    $region9: #{skeleton_residual_transpose.1} parent=1 // pred_fallthru
      _
    // Predicated region
    $region10: #{skeleton_residual_transpose.1} parent=1 // pred_check
      _
    $region11: #{skeleton_residual_transpose.1} parent=1 // pred_check_branch
      %17 = sbr.rel (0) target = $region13
    $region12: #{skeleton_residual_transpose.1} parent=1 // pred_region
      _
    $region13: #{skeleton_residual_transpose.1} parent=1 // pred_fallthru
      _
    // Predicated region
    $region14: #{skeleton_residual_transpose.1} parent=1 // pred_check
      _
    $region15: #{skeleton_residual_transpose.1} parent=1 // pred_check_branch
      %19 = sbr.rel (0) target = $region17
    $region16: #{skeleton_residual_transpose.1} parent=1 // pred_region
      _
    $region17: #{skeleton_residual_transpose.1} parent=1 // pred_fallthru
      _
    // Predicated region
    $region18: #{skeleton_residual_transpose.1} parent=1 // pred_check
      _
    $region19: #{skeleton_residual_transpose.1} parent=1 // pred_check_branch
      %21 = sbr.rel (0) target = $region21
    $region20: #{skeleton_residual_transpose.1} parent=1 // pred_region
      _
    $region21: #{skeleton_residual_transpose.1} parent=1 // pred_fallthru
      _
    // Predicated region
    $region22: #{skeleton_residual_transpose.1} parent=1 // pred_check
      _
    $region23: #{skeleton_residual_transpose.1} parent=1 // pred_check_branch
      %23 = sbr.rel (0) target = $region25
    $region24: #{skeleton_residual_transpose.1} parent=1 // pred_region
      %s25 = ssub.s32 16, 16
      %26 = vsyncadd [#allocation3], %s25
      %s28 = sshll.u32 %s5, 4
      %s29 = int_to_ptr.vmem [resolvable:$true] %s28
      %31 = dma.vmem_to_smem %s29, 16, [#allocation2], [#allocation3]
    $region25: #{skeleton_residual_transpose.1} parent=1 // pred_fallthru
      _
    // Predicated region
    $region26: #{skeleton_residual_transpose.1} parent=1 // pred_check
      _
    $region27: #{skeleton_residual_transpose.1} parent=1 // pred_check_branch
      %33 = sbr.rel (0) target = $region29
    $region28: #{skeleton_residual_transpose.1} parent=1 // pred_region
      %34 = dma.done [#allocation3], 16
    $region29: #{skeleton_residual_transpose.1} parent=1 // pred_fallthru
      _
    %35 = sfence
    %v37 = vld [vmem:[%s0] sm:$0x3]
    %v38 = vld [vmem:[%s1] sm:$0xf]
    %v39 = vld [vmem:[%s1 + $0x4] sm:$0xf]
    %v42 = vunpack.c.l.b16 %v38
    %v43 = vunpack.c.l.b16 %v39
    %v44 = vpack.c.b16 %v43, %v42
    %vm46 = vcmask 130048
    %v48 = vsel %vm46, %v37, 0
    %50 = vmatprep.subr.bf16.mxu0 0
    %51 = vmatpush1.bf16.msra.mxu0 %v44
    %52 = vmatprep.subr.bf16.mxu0 0
    %53 = vmatpush1.bf16.msra.mxu0 0
    %54 = vmatprep.subr.bf16.mxu0 0
    %55 = vmatpush1.bf16.msra.mxu0 0
    %56 = vmatprep.subr.bf16.mxu0 0
    %57 = vmatpush1.bf16.msra.mxu0 0
    %58 = vmatprep.subr.bf16.mxu0 0
    %59 = vmatpush1.bf16.msra.mxu0 0
    %60 = vmatprep.subr.bf16.mxu0 0
    %61 = vmatpush1.bf16.msra.mxu0 0
    %62 = vmatprep.subr.bf16.mxu0 0
    %63 = vmatpush1.bf16.msra.mxu0 0
    %64 = vmatprep.subr.bf16.mxu0 0
    %65 = vmatpush1.bf16.msra.mxu0 0
    %66 = vmatprep.subr.bf16.mxu0 0
    %67 = vmatpush1.bf16.msra.mxu0 0
    %68 = vmatprep.subr.bf16.mxu0 0
    %69 = vmatpush1.bf16.msra.mxu0 0
    %70 = vmatprep.subr.bf16.mxu0 0
    %71 = vmatpush1.bf16.msra.mxu0 0
    %72 = vmatprep.subr.bf16.mxu0 0
    %73 = vmatpush1.bf16.msra.mxu0 0
    %74 = vmatprep.subr.bf16.mxu0 0
    %75 = vmatpush1.bf16.msra.mxu0 0
    %76 = vmatprep.subr.bf16.mxu0 0
    %77 = vmatpush1.bf16.msra.mxu0 0
    %78 = vmatprep.subr.bf16.mxu0 0
    %79 = vmatpush1.bf16.msra.mxu0 0
    %80 = vmatprep.subr.bf16.mxu0 0
    %81 = vmatpush1.bf16.msra.mxu0 0
    %82 = vmatprep.mubr.bf16.mxu0 0
    %83 = vmatmul.mubr.bf16.gmra.mrb[0].mxu0 %v48
    %v84 = vpop.f32.mrb[0].mxu0
    %v85 = vadd.f32 0.0, %v84
    %v86 = vpop.f32.mrb[0].mxu0
    %v87 = vpop.f32.mrb[0].mxu0
    %v88 = vpop.f32.mrb[0].mxu0
    %89 = vdwg.mxu0
    %v90 = vlaneseq
    %v91 = vand.u32 %v90, 127
    %vm92 = vcmp.lt.s32.totalorder %v91, 0
    %v93 = vsub.s32 0, %v91
    %v94 = vsel %vm92, %v93, %v91
    %v95 = vshrl.u32 %v94, 4
    %v96 = vand.u32 %v94, 15
    %v97 = vsub.s32 0, %v96
    %v98 = vsel %vm92, %v97, %v96
    %vm99 = vcmp.ne.s32.totalorder %v98, 0
    %vm100 = vcmp.lt.s32.totalorder %v98, 0
    %vm101 = vmand %vm100, %vm99
    %v102 = vadd.s32 %v98, 16
    %v103 = vsel %vm101, %v102, %v98
    %vm104 = vcmp.ne.s32.totalorder %v103, 0
    %vm105 = vcmp.ne.s32.totalorder %v103, 15
    %107 = vrot.lane.b32.xlu0 %v85, 1
    %v108 = vpop.permute.xlu0 %107
    %vm110 = vcmask 7168
    %v111 = vsel %vm110, 0.0, %v108
    %v112 = vsel %vm104, 1, 0
    %vm113 = vcmp.eq.s32.totalorder %v112, 1
    %v114 = vsel %vm113, %v111, 0.0
    %115 = vrot.lane.b32.xlu0 %v85, 127
    %v116 = vpop.permute.xlu0 %115
    %vm118 = vcmask 1039360
    %v119 = vsel %vm118, %v116, 0.0
    %v120 = vsel %vm105, 1, 0
    %vm121 = vcmp.eq.s32.totalorder %v120, 1
    %v122 = vsel %vm121, %v119, 0.0
    %v123 = vrot.slane %v85, 4
    %vm125 = vcmask 1043456
    %v126 = vsel %vm125, %v114, %v123
    %v127 = vsel %vm125, %v122, 1.0
    %v128 = vld [vmem:[%s2] sm:$0xf]
    %v129 = vpack.c.bf16 %v127, %v126
    %vm130 = vcmask 105472
    %v132 = vsel %vm130, %v128, 0
    %vm134 = vcmask 1045504
    %vm135 = vcmask 1046528
    %v136 = vsel %vm134, 4294967295, 65535
    %v137 = vsel %vm135, %v136, 0
    %v139 = vand.u32 %v129, %v137
    %141 = vmatprep.subr.bf16.mxu0 0
    %142 = vmatpush1.bf16.msra.mxu0 %v139
    %143 = vmatprep.subr.bf16.mxu0 0
    %144 = vmatpush1.bf16.msra.mxu0 0
    %145 = vmatprep.subr.bf16.mxu0 0
    %146 = vmatpush1.bf16.msra.mxu0 0
    %147 = vmatprep.subr.bf16.mxu0 0
    %148 = vmatpush1.bf16.msra.mxu0 0
    %149 = vmatprep.subr.bf16.mxu0 0
    %150 = vmatpush1.bf16.msra.mxu0 0
    %151 = vmatprep.subr.bf16.mxu0 0
    %152 = vmatpush1.bf16.msra.mxu0 0
    %153 = vmatprep.subr.bf16.mxu0 0
    %154 = vmatpush1.bf16.msra.mxu0 0
    %155 = vmatprep.subr.bf16.mxu0 0
    %156 = vmatpush1.bf16.msra.mxu0 0
    %157 = vmatprep.subr.bf16.mxu0 0
    %158 = vmatpush1.bf16.msra.mxu0 0
    %159 = vmatprep.subr.bf16.mxu0 0
    %160 = vmatpush1.bf16.msra.mxu0 0
    %161 = vmatprep.subr.bf16.mxu0 0
    %162 = vmatpush1.bf16.msra.mxu0 0
    %163 = vmatprep.subr.bf16.mxu0 0
    %164 = vmatpush1.bf16.msra.mxu0 0
    %165 = vmatprep.subr.bf16.mxu0 0
    %166 = vmatpush1.bf16.msra.mxu0 0
    %167 = vmatprep.subr.bf16.mxu0 0
    %168 = vmatpush1.bf16.msra.mxu0 0
    %169 = vmatprep.subr.bf16.mxu0 0
    %170 = vmatpush1.bf16.msra.mxu0 0
    %171 = vmatprep.subr.bf16.mxu0 0
    %172 = vmatpush1.bf16.msra.mxu0 0
    %173 = vmatprep.mubr.bf16.mxu0 0
    %174 = vmatmul.mubr.bf16.gmra.mrb[0].mxu0 %v132
    %v175 = vpop.f32.mrb[0].mxu0
    %v176 = vadd.f32 0.0, %v175
    %v177 = vpop.f32.mrb[0].mxu0
    %v178 = vpop.f32.mrb[0].mxu0
    %v179 = vpop.f32.mrb[0].mxu0
    %180 = vdwg.mxu0
    %s181 = sld [smem:[#allocation2]]
    %vm182 = vcmp.ge.f32.partialorder %v176, 0.0
    %v183 = vstv %s181
    %v184 = vmul.f32 %v183, %v176
    %v185 = vsel %vm182, %v176, %v184
    %187 = vrot.lane.b32.xlu0 %v185, 1
    %v188 = vpop.permute.xlu0 %187
    %v190 = vsel %vm110, 0.0, %v188
    %v191 = vsel %vm113, %v190, 0.0
    %192 = vrot.lane.b32.xlu0 %v185, 127
    %v193 = vpop.permute.xlu0 %192
    %v195 = vsel %vm118, %v193, 0.0
    %v196 = vsel %vm121, %v195, 0.0
    %v197 = vld [vmem:[%s3] sm:$0xf]
    %v198 = vld [vmem:[%s3 + $0x4] sm:$0xf]
    %v199 = vpack.c.bf16 %v185, %v191
    %v200 = vpack.c.bf16 1.0, %v196
    %v201 = vsel %vm125, %v85, 1.0
    %v202 = vpack.c.bf16 %v201, %v201
    %v203 = vld [vmem:[%s4] sm:$0xf]
    %v204 = vld [vmem:[%s4 + $0x4] sm:$0xf]
    %v207 = vunpack.c.l.b16 %v203
    %v208 = vunpack.c.l.b16 %v204
    %v209 = vpack.c.b16 %v208, %v207
    %vm210 = vcmask 39936
    %v212 = vsel %vm210, %v209, 0
    %vm214 = vcmask 1041408
    %vm215 = vcmask 1042432
    %v216 = vsel %vm214, 4294967295, 65535
    %v217 = vsel %vm215, %v216, 0
    %v219 = vand.u32 %v202, %v217
    %221 = vmatprep.subr.bf16.mxu0 0
    %222 = vmatpush1.bf16.msra.mxu0 %v219
    %223 = vmatprep.subr.bf16.mxu0 0
    %224 = vmatpush1.bf16.msra.mxu0 0
    %225 = vmatprep.subr.bf16.mxu0 0
    %226 = vmatpush1.bf16.msra.mxu0 0
    %227 = vmatprep.subr.bf16.mxu0 0
    %228 = vmatpush1.bf16.msra.mxu0 0
    %229 = vmatprep.subr.bf16.mxu0 0
    %230 = vmatpush1.bf16.msra.mxu0 0
    %231 = vmatprep.subr.bf16.mxu0 0
    %232 = vmatpush1.bf16.msra.mxu0 0
    %233 = vmatprep.subr.bf16.mxu0 0
    %234 = vmatpush1.bf16.msra.mxu0 0
    %235 = vmatprep.subr.bf16.mxu0 0
    %236 = vmatpush1.bf16.msra.mxu0 0
    %237 = vmatprep.subr.bf16.mxu0 0
    %238 = vmatpush1.bf16.msra.mxu0 0
    %239 = vmatprep.subr.bf16.mxu0 0
    %240 = vmatpush1.bf16.msra.mxu0 0
    %241 = vmatprep.subr.bf16.mxu0 0
    %242 = vmatpush1.bf16.msra.mxu0 0
    %243 = vmatprep.subr.bf16.mxu0 0
    %244 = vmatpush1.bf16.msra.mxu0 0
    %245 = vmatprep.subr.bf16.mxu0 0
    %246 = vmatpush1.bf16.msra.mxu0 0
    %247 = vmatprep.subr.bf16.mxu0 0
    %248 = vmatpush1.bf16.msra.mxu0 0
    %249 = vmatprep.subr.bf16.mxu0 0
    %250 = vmatpush1.bf16.msra.mxu0 0
    %251 = vmatprep.subr.bf16.mxu0 0
    %252 = vmatpush1.bf16.msra.mxu0 0
    %253 = vmatprep.mubr.bf16.mxu0 0
    %254 = vmatmul.mubr.bf16.gmra.mrb[0].mxu0 %v212
    %v255 = vpop.f32.mrb[0].mxu0
    %v256 = vadd.f32 0.0, %v255
    %v257 = vpop.f32.mrb[0].mxu0
    %v258 = vpop.f32.mrb[0].mxu0
    %v259 = vadd.f32 0.0, %v258
    %v260 = vpop.f32.mrb[0].mxu0
    %261 = vdwg.mxu0
    %v264 = vunpack.c.l.b16 %v197
    %v265 = vunpack.c.l.b16 %v198
    %v266 = vpack.c.b16 %v265, %v264
    %vm267 = vcmask 203776
    %v269 = vsel %vm267, %v266, 0
    %vm271 = vcmask 1044480
    %v272 = vsel %vm125, 4294967295, 65535
    %v273 = vsel %vm271, %v272, 0
    %v275 = vand.u32 %v200, %v273
    %277 = vmatprep.subr.bf16.mxu0 0
    %278 = vmatpush1.bf16.msra.mxu0 %v199
    %279 = vmatprep.subr.bf16.mxu0 0
    %280 = vmatpush1.bf16.msra.mxu0 %v275
    %281 = vmatprep.subr.bf16.mxu0 0
    %282 = vmatpush1.bf16.msra.mxu0 0
    %283 = vmatprep.subr.bf16.mxu0 0
    %284 = vmatpush1.bf16.msra.mxu0 0
    %285 = vmatprep.subr.bf16.mxu0 0
    %286 = vmatpush1.bf16.msra.mxu0 0
    %287 = vmatprep.subr.bf16.mxu0 0
    %288 = vmatpush1.bf16.msra.mxu0 0
    %289 = vmatprep.subr.bf16.mxu0 0
    %290 = vmatpush1.bf16.msra.mxu0 0
    %291 = vmatprep.subr.bf16.mxu0 0
    %292 = vmatpush1.bf16.msra.mxu0 0
    %293 = vmatprep.subr.bf16.mxu0 0
    %294 = vmatpush1.bf16.msra.mxu0 0
    %295 = vmatprep.subr.bf16.mxu0 0
    %296 = vmatpush1.bf16.msra.mxu0 0
    %297 = vmatprep.subr.bf16.mxu0 0
    %298 = vmatpush1.bf16.msra.mxu0 0
    %299 = vmatprep.subr.bf16.mxu0 0
    %300 = vmatpush1.bf16.msra.mxu0 0
    %301 = vmatprep.subr.bf16.mxu0 0
    %302 = vmatpush1.bf16.msra.mxu0 0
    %303 = vmatprep.subr.bf16.mxu0 0
    %304 = vmatpush1.bf16.msra.mxu0 0
    %305 = vmatprep.subr.bf16.mxu0 0
    %306 = vmatpush1.bf16.msra.mxu0 0
    %307 = vmatprep.subr.bf16.mxu0 0
    %308 = vmatpush1.bf16.msra.mxu0 0
    %309 = vmatprep.mubr.bf16.mxu0 0
    %310 = vmatmul.mubr.bf16.gmra.mrb[0].mxu0 %v269
    %v311 = vpop.f32.mrb[0].mxu0
    %v312 = vadd.f32 %v256, %v311
    %v313 = vpop.f32.mrb[0].mxu0
    %v314 = vpop.f32.mrb[0].mxu0
    %v315 = vadd.f32 %v259, %v314
    %v316 = vpop.f32.mrb[0].mxu0
    %317 = vdwg.mxu0
    %s318 = sld [smem:[#allocation2 + $0x1]]
    %vm319 = vcmp.ge.f32.partialorder %v312, 0.0
    %vm320 = vcmp.ge.f32.partialorder %v315, 0.0
    %v321 = vstv %s318
    %v322 = vmul.f32 %v321, %v312
    %v323 = vmul.f32 %v321, %v315
    %v324 = vsel %vm319, %v312, %v322
    %v325 = vsel %vm320, %v315, %v323
    %326 = vst [vmem:[%s6] sm:$0xff] %v324
    %327 = vst [vmem:[%s6 + $0x8] sm:$0xff] %v325
    // Predicated region
    $region30: #{skeleton_residual_transpose.1} parent=1 // pred_check
      _
    $region31: #{skeleton_residual_transpose.1} parent=1 // pred_check_branch
      %329 = sbr.rel (0) target = $region33
    $region32: #{skeleton_residual_transpose.1} parent=1 // pred_region
      _
    $region33: #{skeleton_residual_transpose.1} parent=1 // pred_fallthru
      _
    // Predicated region
    $region34: #{skeleton_residual_transpose.1} parent=1 // pred_check
      _
    $region35: #{skeleton_residual_transpose.1} parent=1 // pred_check_branch
      %331 = sbr.rel (0) target = $region37
    $region36: #{skeleton_residual_transpose.1} parent=1 // pred_region
      _
    $region37: #{skeleton_residual_transpose.1} parent=1 // pred_fallthru
      _
    %332 = vsyncpa [#allocation3], 1

</llo_original>
